<compile_context>
chip_gen: v7x
topology: tpu7x:2x2x1
jax: 0.10.0
libtpu: 0.0.40
codegen_flags: <defaults>
</compile_context>

<pallas_src>
import jax
import jax.numpy as jnp
from jax.experimental import pallas as pl
from jax.experimental.pallas import tpu as pltpu


def _cdiv(a, b):
    return -(-a // b)


def _dense_interp_kernel(wt_ref, x_ref, o_ref):
    # wt_ref: (M, T)       resident W^T
    # x_ref : (nb, T, tc)  batch-blocked slab of x in natural (T, C) layout
    # o_ref : (nb, M, tc)  lane-dense over channels
    wt = wt_ref[...]
    nb = x_ref.shape[0]
    # Short static unroll over the batch block: each iteration is a plain
    # row-major (M, T) @ (T, tc) MXU matmul with a lane-dense (tc-wide) output.
    for i in range(nb):
        o_ref[i] = jnp.dot(
            wt, x_ref[i], preferred_element_type=jnp.float32
        ).astype(o_ref.dtype)


def _chip_budgets():
    """Returns (target x-bytes per grid step, usable VMEM cap, has_two_tensorcores)."""
    kind = ""
    try:
        kind = jax.devices()[0].device_kind.lower()
    except Exception:
        pass

    vmem_phys = None
    try:
        vmem_phys = int(pltpu.get_tpu_info().vmem_capacity_bytes)
    except Exception:
        vmem_phys = None

    is_v7 = "7" in kind
    is_v5e = ("v5e" in kind) or ("v5" in kind and "lite" in kind)

    if vmem_phys is None:
        vmem_phys = (64 << 20) if is_v7 else (128 << 20)

    if is_v7:
        target = 6 << 20      # ~3.2 TB/s HBM -> ~1.1 MB/step break-even; aim 4-8 MiB
    elif is_v5e:
        target = 2 << 20      # ~820 GB/s HBM -> 1-2 MiB/step is enough
    else:
        target = 3 << 20      # v6e-ish default (~1.3-1.4 TB/s)

    vmem_cap = vmem_phys * 3 // 4   # leave headroom for compiler-internal scratch
    return target, vmem_cap, is_v7


def _choose_tiles(B, T, C, dsize, target_step_bytes, vmem_cap, two_cores):
    # Never let one (double-buffered) x slab claim more than ~1/4 of usable VMEM.
    target = min(target_step_bytes, vmem_cap // 4)
    per_batch = T * C * dsize
    if per_batch <= target:
        # Full C per step: the x slab DMA is one contiguous T*C*dsize transfer per
        # batch row.  Block batches to reach the per-step byte target.
        tc = C
        nb = max(1, min(B, target // max(1, per_batch)))
        if two_cores and B >= 2:
            # Keep >= 2 steps on the leading parallel (batch) axis for megacore.
            nb = min(nb, _cdiv(B, 2))
    else:
        # One batch row per step; tile channels with a bounded, lane-aligned width.
        nb = 1
        tc = max(128, (target // (T * dsize)) // 128 * 128)
        tc = min(tc, C)   # tc == C (full dim) is always a legal block width
    return nb, tc


def dense_interpolation(x, wt):
    """DenseInterpolation.forward as a Pallas TPU kernel.

    x : (B, T, C) activations.
    wt: (M, T) == W^T with W[t, m] = (1 - |t/T - m/M|)^2 (fixed, non-trainable).

    Returns (B, C*M), matching the PyTorch module.
    """
    B, T, C = x.shape
    M = wt.shape[0]
    dsize = jnp.dtype(x.dtype).itemsize
    wsize = jnp.dtype(wt.dtype).itemsize

    target, vmem_cap, two_cores = _chip_budgets()
    nb, tc = _choose_tiles(B, T, C, dsize, target, vmem_cap, two_cores)
    grid = (_cdiv(B, nb), _cdiv(C, tc))

    # Real requirement: double-buffered x & out slabs + (double-buffered) W^T.
    need = 2 * nb * tc * dsize * (T + M) + 2 * M * T * wsize
    vmem_bytes = max(min(need + (8 << 20), vmem_cap), need)

    cost = pl.CostEstimate(
        flops=2 * B * C * M * T,
        transcendentals=0,
        bytes_accessed=dsize * (B * T * C + B * C * M) + wsize * T * M,
    )

    out_bmc = pl.pallas_call(
        _dense_interp_kernel,
        out_shape=jax.ShapeDtypeStruct((B, M, C), x.dtype),
        grid_spec=pltpu.PrefetchScalarGridSpec(
            num_scalar_prefetch=0,
            grid=grid,
            in_specs=[
                pl.BlockSpec((M, T), lambda i, j: (0, 0)),          # W^T (tiny, resident)
                pl.BlockSpec((nb, T, tc), lambda i, j: (i, 0, j)),  # batch-blocked x slab
            ],
            out_specs=pl.BlockSpec((nb, M, tc), lambda i, j: (i, 0, j)),
        ),
        compiler_params=pltpu.CompilerParams(
            dimension_semantics=("parallel", "parallel"),
            vmem_limit_bytes=int(vmem_bytes),
        ),
        cost_estimate=cost,
    )(wt, x)  # -> (B, M, C), lane-dense over C

    # Module contract: (B, C, M) flattened row-major -> (B, C*M).
    # TODO(synk): if the downstream consumer can accept (B, M, C) directly (or fold
    # the permute into its contraction dims), drop this transpose — it is an extra
    # HBM round-trip over the (small) output.
    return jnp.transpose(out_bmc, (0, 2, 1)).reshape(B, C * M)


def _make_interpolation_matrix_t(M, seq_len, dtype=jnp.float32):
    # Build W^T = (M, T) directly so the hot path never transposes W.
    m = jnp.arange(M, dtype=dtype).reshape(M, 1) / M
    t = jnp.arange(seq_len, dtype=dtype).reshape(1, seq_len) / seq_len
    return (1.0 - jnp.abs(t - m)) ** 2  # wt[m, t] == W[t, m]


def _reference(x, wt):
    B = x.shape[0]
    y = jnp.einsum("btc,mt->bcm", x, wt)  # == matmul(x.transpose(1,2), W)
    return y.reshape(B, -1)


if __name__ == "__main__":
    B, seq_len, hidden, M = 2, 16, 32, 8

    key = jax.random.PRNGKey(0)
    x = jax.random.normal(key, (B, seq_len, hidden), dtype=jnp.float32)
    wt = _make_interpolation_matrix_t(M, seq_len)

    out = dense_interpolation(x, wt)
    out = jax.block_until_ready(out)

    ref = _reference(x, wt)
    assert out.shape == (B, hidden * M)
    assert jnp.allclose(out, ref, atol=1e-5, rtol=1e-5), "mismatch vs reference"

    print("KERNEL_OK")
</pallas_src>

<mosaic_0001>
module attributes {stable_mosaic.version = 11 : i64} {
  func.func @_dense_interp_kernel(%arg0: i32, %arg1: i32, %arg2: memref<8x16xf32, #tpu.memory_space<vmem>>, %arg3: memref<2x16x32xf32, #tpu.memory_space<vmem>>, %arg4: memref<2x8x32xf32, #tpu.memory_space<vmem>>) attributes {dimension_semantics = [#tpu.dimension_semantics<parallel>, #tpu.dimension_semantics<parallel>], iteration_bounds = array<i64: 1, 1>, scalar_prefetch = 0 : i64, scratch_operands = 0 : i64, tpu.core_type = #tpu.core_type<tc>, window_params = [{pipeline_mode = #tpu.pipeline_mode<synchronous>, transform_indices = @transform_0, window_bounds = array<i64: 8, 16>}, {transform_indices = @transform_1, window_bounds = array<i64: 2, 16, 32>}, {transform_indices = @transform_2, window_bounds = array<i64: 2, 8, 32>}]} {
    %c0 = arith.constant 0 : index
    %c0_0 = arith.constant 0 : index
    %0 = vector.load %arg2[%c0, %c0_0] : memref<8x16xf32, #tpu.memory_space<vmem>>, vector<8x16xf32>
    %c0_1 = arith.constant 0 : index
    %c0_2 = arith.constant 0 : index
    %c0_3 = arith.constant 0 : index
    %1 = vector.load %arg3[%c0_1, %c0_2, %c0_3] : memref<2x16x32xf32, #tpu.memory_space<vmem>>, vector<1x16x32xf32>
    %2 = vector.shape_cast %1 : vector<1x16x32xf32> to vector<16x32xf32>
    %cst = arith.constant dense<0.000000e+00> : vector<8x32xf32>
    %3 = tpu.matmul %0, %2, %cst {dimension_numbers = #tpu.dot_dimension_numbers<[1], [0], [0], [1], [0, 0, 1, 1], [], []>} : vector<8x16xf32>, vector<16x32xf32>, vector<8x32xf32> -> vector<8x32xf32>
    %c0_4 = arith.constant 0 : index
    %c0_5 = arith.constant 0 : index
    %c0_6 = arith.constant 0 : index
    %4 = vector.load %arg4[%c0_4, %c0_5, %c0_6] : memref<2x8x32xf32, #tpu.memory_space<vmem>>, vector<1x8x32xf32>
    %5 = vector.shape_cast %4 : vector<1x8x32xf32> to vector<8x32xf32>
    %6 = vector.shape_cast %3 : vector<8x32xf32> to vector<1x8x32xf32>
    tpu.vector_store %arg4[%c0_4, %c0_5, %c0_6], %6 {strides = array<i32>} : memref<2x8x32xf32, #tpu.memory_space<vmem>>, vector<1x8x32xf32>,
    %c1 = arith.constant 1 : index
    %c0_7 = arith.constant 0 : index
    %c0_8 = arith.constant 0 : index
    %7 = vector.load %arg3[%c1, %c0_7, %c0_8] : memref<2x16x32xf32, #tpu.memory_space<vmem>>, vector<1x16x32xf32>
    %8 = vector.shape_cast %7 : vector<1x16x32xf32> to vector<16x32xf32>
    %cst_9 = arith.constant dense<0.000000e+00> : vector<8x32xf32>
    %9 = tpu.matmul %0, %8, %cst_9 {dimension_numbers = #tpu.dot_dimension_numbers<[1], [0], [0], [1], [0, 0, 1, 1], [], []>} : vector<8x16xf32>, vector<16x32xf32>, vector<8x32xf32> -> vector<8x32xf32>
    %c1_10 = arith.constant 1 : index
    %c0_11 = arith.constant 0 : index
    %c0_12 = arith.constant 0 : index
    %10 = vector.load %arg4[%c1_10, %c0_11, %c0_12] : memref<2x8x32xf32, #tpu.memory_space<vmem>>, vector<1x8x32xf32>
    %11 = vector.shape_cast %10 : vector<1x8x32xf32> to vector<8x32xf32>
    %12 = vector.shape_cast %9 : vector<8x32xf32> to vector<1x8x32xf32>
    tpu.vector_store %arg4[%c1_10, %c0_11, %c0_12], %12 {strides = array<i32>} : memref<2x8x32xf32, #tpu.memory_space<vmem>>, vector<1x8x32xf32>,
    return
  }
  func.func @transform_0(%arg0: i32, %arg1: i32) -> (i32, i32) {
    %c0_i32 = arith.constant 0 : i32
    %c0_i32_0 = arith.constant 0 : i32
    %c0_i32_1 = arith.constant 0 : i32
    return %c0_i32, %c0_i32_0 : i32, i32
  }
  func.func @transform_1(%arg0: i32, %arg1: i32) -> (i32, i32, i32) {
    %c0_i32 = arith.constant 0 : i32
    %c0_i32_0 = arith.constant 0 : i32
    return %arg0, %c0_i32, %arg1 : i32, i32, i32
  }
  func.func @transform_2(%arg0: i32, %arg1: i32) -> (i32, i32, i32) {
    %c0_i32 = arith.constant 0 : i32
    %c0_i32_0 = arith.constant 0 : i32
    return %arg0, %c0_i32, %arg1 : i32, i32, i32
  }
}

</mosaic_0001>

<llo_original>
// kernel: tpu_custom_call.1
$region0: #{tpu_custom_call.1}
  #allocation0 [shape = 'u32[]', space=smem, size = 0x4, offset = 0x4, fixed_abs, tag = 'smem constant byte address 0x4 - core index']
  #allocation1 [shape = 'u32[144,128]{1,0:T(1,128)}', space=vmem, size = 0x12000, scoped, tag = 'internal scratch']
  %s0 = inlined_call_operand.hbm [shape: f32[8,16], index: 0, kind: input, shape index: {}]
  %s1 = inlined_call_operand.hbm [shape: f32[2,16,32], index: 1, kind: input, shape index: {}]
  %s2 = inlined_call_operand.hbm [shape: f32[2,8,32], index: 2, kind: output, shape index: {}]
  %s3 = sld [smem:[#allocation0]]
  $region26: #{tpu_custom_call.1} parent=0
    _
  %s5 = ssub.s32 1, %s3
  %s6 = scalar_select 0, %s5, %s3
  $region1: #{tpu_custom_call.1} parent=0
    #allocation2 [shape = 'u8[4096]{0}', space=vmem, size = 0x1000, scoped, tag = 'input window, operand 0, single buffered']
    #allocation3 [shape = 's32[1]{0}', space=sflag, size = 0x4, scoped, tag = 'scoped memory for tpu_custom_call.1']
    #allocation4 [shape = 's32[1]{0}', space=sflag, size = 0x4, scoped, tag = 'scoped memory for tpu_custom_call.1']
    #allocation5 [shape = 'u8[16384]{0}', space=vmem, size = 0x4000, scoped, tag = 'input window, operand 1, single buffered']
    #allocation6 [shape = 's32[1]{0}', space=sflag, size = 0x4, scoped, tag = 'scoped memory for tpu_custom_call.1']
    #allocation7 [shape = 'u8[8192]{0}', space=vmem, size = 0x2000, scoped, tag = 'output window, operand 0, single buffered']
    %7 = vsyncpa [#allocation3], 0
    %8 = vsyncpa [#allocation6], 0
    %9 = vsyncpa [#allocation4], 0
    // Predicated region
    $region2: #{tpu_custom_call.1} parent=1 // pred_check
      _
    $region3: #{tpu_custom_call.1} parent=1 // pred_check_branch
      %11 = sbr.rel (0) target = $region5
    $region4: #{tpu_custom_call.1} parent=1 // pred_region
      %s13 = ssub.s32 128, 128
      %14 = vsyncadd [#allocation3], %s13
      %s16 = sshll.u32 [#allocation2], 4
      %s17 = int_to_ptr.vmem [resolvable:$true] %s16
      %19 = dma.hbm_to_vmem [thread:$0]  %s0, 128, %s17, [#allocation3]
    $region5: #{tpu_custom_call.1} parent=1 // pred_fallthru
      _
    // Predicated region
    $region6: #{tpu_custom_call.1} parent=1 // pred_check
      _
    $region7: #{tpu_custom_call.1} parent=1 // pred_check_branch
      %21 = sbr.rel (0) target = $region9
    $region8: #{tpu_custom_call.1} parent=1 // pred_region
      %s23 = ssub.s32 512, 512
      %24 = vsyncadd [#allocation6], %s23
      %s25 = sshll.u32 [#allocation5], 4
      %s26 = int_to_ptr.vmem [resolvable:$true] %s25
      %31 = dma.hbm_to_vmem [thread:$0]  %s1, 512, %s26, [#allocation6], 128, 128, 8
    $region9: #{tpu_custom_call.1} parent=1 // pred_fallthru
      _
    // Predicated region
    $region10: #{tpu_custom_call.1} parent=1 // pred_check
      _
    $region11: #{tpu_custom_call.1} parent=1 // pred_check_branch
      %33 = sbr.rel (0) target = $region13
    $region12: #{tpu_custom_call.1} parent=1 // pred_region
      %34 = dma.done [#allocation3], 128
    $region13: #{tpu_custom_call.1} parent=1 // pred_fallthru
      _
    // Predicated region
    $region14: #{tpu_custom_call.1} parent=1 // pred_check
      _
    $region15: #{tpu_custom_call.1} parent=1 // pred_check_branch
      %36 = sbr.rel (0) target = $region17
    $region16: #{tpu_custom_call.1} parent=1 // pred_region
      %37 = dma.done [#allocation6], 512
    $region17: #{tpu_custom_call.1} parent=1 // pred_fallthru
      _
    %v38 = vld [vmem:[#allocation2] sm:$0xff]
    %v39 = vld [vmem:[#allocation5] sm:$0xff]
    %v40 = vld [vmem:[#allocation5 + $0x8] sm:$0xff]
    %vm41 = vcmask 130048
    %v43 = vsel %vm41, %v38, 0
    %45 = vmatprep.subr.mxu0 0.0
    %46 = vmatpush1.msra.mxu0 %v39
    %47 = vmatprep.subr.mxu0 0.0
    %48 = vmatpush1.msra.mxu0 %v40
    %49 = vmatprep.subr.mxu0 0.0
    %50 = vmatpush1.msra.mxu0 0.0
    %51 = vmatprep.subr.mxu0 0.0
    %52 = vmatpush1.msra.mxu0 0.0
    %53 = vmatprep.subr.mxu0 0.0
    %54 = vmatpush1.msra.mxu0 0.0
    %55 = vmatprep.subr.mxu0 0.0
    %56 = vmatpush1.msra.mxu0 0.0
    %57 = vmatprep.subr.mxu0 0.0
    %58 = vmatpush1.msra.mxu0 0.0
    %59 = vmatprep.subr.mxu0 0.0
    %60 = vmatpush1.msra.mxu0 0.0
    %61 = vmatprep.subr.mxu0 0.0
    %62 = vmatpush1.msra.mxu0 0.0
    %63 = vmatprep.subr.mxu0 0.0
    %64 = vmatpush1.msra.mxu0 0.0
    %65 = vmatprep.subr.mxu0 0.0
    %66 = vmatpush1.msra.mxu0 0.0
    %67 = vmatprep.subr.mxu0 0.0
    %68 = vmatpush1.msra.mxu0 0.0
    %69 = vmatprep.subr.mxu0 0.0
    %70 = vmatpush1.msra.mxu0 0.0
    %71 = vmatprep.subr.mxu0 0.0
    %72 = vmatpush1.msra.mxu0 0.0
    %73 = vmatprep.subr.mxu0 0.0
    %74 = vmatpush1.msra.mxu0 0.0
    %75 = vmatprep.subr.mxu0 0.0
    %76 = vmatpush1.msra.mxu0 0.0
    %77 = vmatprep.subr.mxu0 0.0
    %78 = vmatpush1.msra.mxu0 0.0
    %79 = vmatprep.subr.mxu0 0.0
    %80 = vmatpush1.msra.mxu0 0.0
    %81 = vmatprep.subr.mxu0 0.0
    %82 = vmatpush1.msra.mxu0 0.0
    %83 = vmatprep.subr.mxu0 0.0
    %84 = vmatpush1.msra.mxu0 0.0
    %85 = vmatprep.subr.mxu0 0.0
    %86 = vmatpush1.msra.mxu0 0.0
    %87 = vmatprep.subr.mxu0 0.0
    %88 = vmatpush1.msra.mxu0 0.0
    %89 = vmatprep.subr.mxu0 0.0
    %90 = vmatpush1.msra.mxu0 0.0
    %91 = vmatprep.subr.mxu0 0.0
    %92 = vmatpush1.msra.mxu0 0.0
    %93 = vmatprep.subr.mxu0 0.0
    %94 = vmatpush1.msra.mxu0 0.0
    %95 = vmatprep.subr.mxu0 0.0
    %96 = vmatpush1.msra.mxu0 0.0
    %97 = vmatprep.subr.mxu0 0.0
    %98 = vmatpush1.msra.mxu0 0.0
    %99 = vmatprep.subr.mxu0 0.0
    %100 = vmatpush1.msra.mxu0 0.0
    %101 = vmatprep.subr.mxu0 0.0
    %102 = vmatpush1.msra.mxu0 0.0
    %103 = vmatprep.subr.mxu0 0.0
    %104 = vmatpush1.msra.mxu0 0.0
    %105 = vmatprep.subr.mxu0 0.0
    %106 = vmatpush1.msra.mxu0 0.0
    %107 = vmatprep.subr.mxu0 0.0
    %108 = vmatpush1.msra.mxu0 0.0
    %109 = vmatprep.mubr.f32.mxu0 0.0
    %110 = vmatmul.mubr.f32.gmra.mrb[0].mxu0 %v43
    %v111 = vpop.f32.mrb[0].mxu0
    %v112 = vadd.f32 0.0, %v111
    %v113 = vpop.f32.mrb[0].mxu0
    %114 = vdwg.mxu0
    %vm115 = vcmask 261120
    %116 = vst.msk [vmem:[#allocation7] sm:$0xff] %vm115, %v112
    %s117 = scalar_lea.vmem [#allocation5], 16
    %v118 = vld [vmem:[%s117] sm:$0xff]
    %v119 = vld [vmem:[%s117 + $0x8] sm:$0xff]
    %120 = vmatprep.subr.mxu0 0.0
    %121 = vmatpush1.msra.mxu0 %v118
    %122 = vmatprep.subr.mxu0 0.0
    %123 = vmatpush1.msra.mxu0 %v119
    %124 = vmatprep.subr.mxu0 0.0
    %125 = vmatpush1.msra.mxu0 0.0
    %126 = vmatprep.subr.mxu0 0.0
    %127 = vmatpush1.msra.mxu0 0.0
    %128 = vmatprep.subr.mxu0 0.0
    %129 = vmatpush1.msra.mxu0 0.0
    %130 = vmatprep.subr.mxu0 0.0
    %131 = vmatpush1.msra.mxu0 0.0
    %132 = vmatprep.subr.mxu0 0.0
    %133 = vmatpush1.msra.mxu0 0.0
    %134 = vmatprep.subr.mxu0 0.0
    %135 = vmatpush1.msra.mxu0 0.0
    %136 = vmatprep.subr.mxu0 0.0
    %137 = vmatpush1.msra.mxu0 0.0
    %138 = vmatprep.subr.mxu0 0.0
    %139 = vmatpush1.msra.mxu0 0.0
    %140 = vmatprep.subr.mxu0 0.0
    %141 = vmatpush1.msra.mxu0 0.0
    %142 = vmatprep.subr.mxu0 0.0
    %143 = vmatpush1.msra.mxu0 0.0
    %144 = vmatprep.subr.mxu0 0.0
    %145 = vmatpush1.msra.mxu0 0.0
    %146 = vmatprep.subr.mxu0 0.0
    %147 = vmatpush1.msra.mxu0 0.0
    %148 = vmatprep.subr.mxu0 0.0
    %149 = vmatpush1.msra.mxu0 0.0
    %150 = vmatprep.subr.mxu0 0.0
    %151 = vmatpush1.msra.mxu0 0.0
    %152 = vmatprep.subr.mxu0 0.0
    %153 = vmatpush1.msra.mxu0 0.0
    %154 = vmatprep.subr.mxu0 0.0
    %155 = vmatpush1.msra.mxu0 0.0
    %156 = vmatprep.subr.mxu0 0.0
    %157 = vmatpush1.msra.mxu0 0.0
    %158 = vmatprep.subr.mxu0 0.0
    %159 = vmatpush1.msra.mxu0 0.0
    %160 = vmatprep.subr.mxu0 0.0
    %161 = vmatpush1.msra.mxu0 0.0
    %162 = vmatprep.subr.mxu0 0.0
    %163 = vmatpush1.msra.mxu0 0.0
    %164 = vmatprep.subr.mxu0 0.0
    %165 = vmatpush1.msra.mxu0 0.0
    %166 = vmatprep.subr.mxu0 0.0
    %167 = vmatpush1.msra.mxu0 0.0
    %168 = vmatprep.subr.mxu0 0.0
    %169 = vmatpush1.msra.mxu0 0.0
    %170 = vmatprep.subr.mxu0 0.0
    %171 = vmatpush1.msra.mxu0 0.0
    %172 = vmatprep.subr.mxu0 0.0
    %173 = vmatpush1.msra.mxu0 0.0
    %174 = vmatprep.subr.mxu0 0.0
    %175 = vmatpush1.msra.mxu0 0.0
    %176 = vmatprep.subr.mxu0 0.0
    %177 = vmatpush1.msra.mxu0 0.0
    %178 = vmatprep.subr.mxu0 0.0
    %179 = vmatpush1.msra.mxu0 0.0
    %180 = vmatprep.subr.mxu0 0.0
    %181 = vmatpush1.msra.mxu0 0.0
    %182 = vmatprep.subr.mxu0 0.0
    %183 = vmatpush1.msra.mxu0 0.0
    %184 = vmatprep.mubr.f32.mxu0 0.0
    %185 = vmatmul.mubr.f32.gmra.mrb[0].mxu0 %v43
    %v186 = vpop.f32.mrb[0].mxu0
    %v187 = vadd.f32 0.0, %v186
    %v188 = vpop.f32.mrb[0].mxu0
    %189 = vdwg.mxu0
    %s190 = scalar_lea.vmem [#allocation7], 8
    %191 = vst.msk [vmem:[%s190] sm:$0xff] %vm115, %v187
    // Predicated region
    $region18: #{tpu_custom_call.1} parent=1 // pred_check
      _
    $region19: #{tpu_custom_call.1} parent=1 // pred_check_branch
      %193 = sbr.rel (0) target = $region21
    $region20: #{tpu_custom_call.1} parent=1 // pred_region
      %s195 = ssub.s32 256, 256
      %196 = vsyncadd [#allocation4], %s195
      %s197 = sshll.u32 [#allocation7], 4
      %s198 = int_to_ptr.vmem [resolvable:$true] %s197
      %203 = dma.vmem_to_hbm [thread:$0]  %s198, 256, %s2, [#allocation4], 128, 128, 8
    $region21: #{tpu_custom_call.1} parent=1 // pred_fallthru
      _
    // Predicated region
    $region22: #{tpu_custom_call.1} parent=1 // pred_check
      _
    $region23: #{tpu_custom_call.1} parent=1 // pred_check_branch
      %205 = sbr.rel (0) target = $region25
    $region24: #{tpu_custom_call.1} parent=1 // pred_region
      %206 = dma.done [#allocation4], 256
    $region25: #{tpu_custom_call.1} parent=1 // pred_fallthru
      _
    %207 = vsyncpa [#allocation3], 1
    %208 = vsyncpa [#allocation6], 1
    %209 = vsyncpa [#allocation4], 1

</llo_original>
